<compile_context>
chip_gen: v5e
topology: v5e:2x2
jax: 0.10.0
libtpu: 0.0.40
codegen_flags: <defaults>
</compile_context>

<pallas_src>
import functools

import jax
import jax.numpy as jnp
from jax.experimental import pallas as pl
from jax.experimental.pallas import tpu as pltpu


def _cost_kernel(left_ref, right_ref, out_ref, *, d_block, max_disp):
    """Computes `d_block` disparity slices for one (B, C, h_tile, W_pad) tile."""
    di = pl.program_id(1)                          # disparity-block index (inner axis)
    left = left_ref[...]                           # (B, C, h_tile, W_pad)
    right = right_ref[...]

    b, c, ht, wp = left.shape
    rows = b * c * ht
    w_out = out_ref.shape[-1]                      # true (unpadded) W of the output

    # Collapse leading dims: ht is a multiple of the sublane count and wp a
    # multiple of 128 -> layout-free reshape, canonical 2-D roll.
    left2d = left.reshape(rows, wp)
    right2d = right.reshape(rows, wp)

    # Small (1, W_pad) column-index mask, broadcast by jnp.where (no full-tile iota).
    w_idx = jax.lax.broadcasted_iota(jnp.int32, (1, wp), 1)

    # One dynamic XLU rotation per disparity block; afterwards only static
    # roll-by-1 per disparity (single cheap vrot).
    d_base = di * d_block
    rolled = pltpu.roll(right2d, d_base, axis=1)
    rem = max_disp % d_block                       # tail size (0 -> no guards needed)

    for j in range(d_block):                       # short static unroll
        if j > 0:
            rolled = pltpu.roll(rolled, 1, axis=1)
        d = d_base + j                             # current disparity (dynamic scalar)

        def _emit(rolled=rolled, d=d, j=j):
            # rolled[:, w] = right[:, w - d] for w >= d (wrap-around columns masked).
            diff = left2d - rolled
            diff = jnp.where(w_idx >= d, diff, 0.0)
            diff4 = diff.reshape(b, c, ht, wp)
            out_ref[:, :, j, :, :] = diff4[:, :, :, :w_out].astype(out_ref.dtype)

        if rem != 0 and j >= rem:
            # Only the cdiv-padded tail of the disparity grid needs a guard.
            pl.when(d < max_disp)(_emit)
        else:
            _emit()


def cost_generator(left_feature, right_feature, max_disp_at_scale, *, out_dtype=None):
    """Pallas equivalent of CostGenerator.forward.

    Pass out_dtype=jnp.bfloat16 to halve the (dominant) HBM write traffic when
    the downstream cost-aggregation network tolerates bf16.
    """
    assert left_feature.shape == right_feature.shape
    assert left_feature.dtype == right_feature.dtype
    assert max_disp_at_scale >= 1
    B, C, H, W = left_feature.shape
    in_dtype = left_feature.dtype
    out_dtype = in_dtype if out_dtype is None else jnp.dtype(out_dtype)

    in_itemsize = jnp.dtype(in_dtype).itemsize
    out_itemsize = jnp.dtype(out_dtype).itemsize
    # Sublane multiple covering both input and output dtypes.
    sub = max(8 * max(1, 4 // in_itemsize), 8 * max(1, 4 // out_itemsize))

    # --- Pad ONLY the small inputs (lane alignment for the in-VMEM roll). ---
    W_pad = pl.cdiv(W, 128) * 128
    if W_pad != W:
        pad = ((0, 0), (0, 0), (0, 0), (0, W_pad - W))
        left_p = jnp.pad(left_feature, pad)
        right_p = jnp.pad(right_feature, pad)
    else:
        left_p, right_p = left_feature, right_feature

    # --- Generation-aware VMEM capacity / budget. ---
    try:
        vmem_cap = int(pltpu.get_tpu_info().vmem_capacity_bytes)
        if vmem_cap <= 0:
            raise ValueError("bad vmem capacity")
    except Exception:
        vmem_cap = 64 << 20                         # conservative (v7x per-TC)
    budget = max(vmem_cap - (24 << 20), vmem_cap // 2)   # live double-buffered blocks

    # --- Disparity blocking: keep d_block large even for awkward max_disp. ---
    d_block = min(8, max_disp_at_scale)
    if max_disp_at_scale > 8:
        for cand in range(8, 3, -1):                # prefer an exact divisor >= 4
            if max_disp_at_scale % cand == 0:
                d_block = cand
                break
        else:
            d_block = 8                             # cdiv grid + guarded tail

    def footprint(h_tile, d_blk):
        in_b = 2 * 2 * B * C * h_tile * W_pad * in_itemsize      # 2 inputs x 2 bufs
        out_b = 2 * B * C * d_blk * h_tile * W_pad * out_itemsize  # 2 bufs (lane-padded)
        return in_b + out_b

    # Fallback (e.g. v7x with very large B*C*W): shrink d_block so the minimum
    # H tile still fits the budget.
    while d_block > 1 and footprint(sub, d_block) > budget:
        d_block //= 2
    # TODO(synk): if footprint(sub, 1) still exceeds the budget (huge B*C*W),
    # tile W with a max_disp-column halo on the right feature instead.

    # --- H tiling: largest tile fitting the budget, then balance the tiles and
    #     guarantee >= 2 "parallel" tiles when possible (v7x megacore). ---
    H_ceil = pl.cdiv(H, sub) * sub
    h_fit = sub
    for cand in range(sub, H_ceil + 1, sub):
        if footprint(cand, d_block) <= budget:
            h_fit = cand
        else:
            break
    n_h = pl.cdiv(H_ceil, h_fit)
    if H_ceil >= 2 * sub:
        n_h = max(n_h, 2)
    h_tile = sub * pl.cdiv(pl.cdiv(H_ceil, n_h), sub)

    grid_h = pl.cdiv(H, h_tile)
    grid_d = pl.cdiv(max_disp_at_scale, d_block)

    vmem_limit = min(footprint(h_tile, d_block) + (8 << 20), vmem_cap - (8 << 20))
    vmem_limit = max(vmem_limit, 16 << 20)

    # Inputs: block index constant across the (inner) disparity axis -> the
    # feature tiles stay resident in VMEM, no re-DMA per disparity.
    feat_spec = pl.BlockSpec((B, C, h_tile, W_pad), lambda hi, di: (0, 0, hi, 0))
    # Output at its TRUE shape: last dim = full W (masked stores), no post-crop.
    out_spec = pl.BlockSpec(
        (B, C, d_block, h_tile, W), lambda hi, di: (0, 0, di, hi, 0)
    )

    bytes_accessed = int(
        2 * B * C * H * W_pad * in_itemsize
        + B * C * max_disp_at_scale * H * W * out_itemsize
    )
    cost_est = pl.CostEstimate(
        flops=int(2 * B * C * max_disp_at_scale * H * W),
        transcendentals=0,
        bytes_accessed=bytes_accessed,
    )

    return pl.pallas_call(
        functools.partial(_cost_kernel, d_block=d_block, max_disp=max_disp_at_scale),
        out_shape=jax.ShapeDtypeStruct((B, C, max_disp_at_scale, H, W), out_dtype),
        grid=(grid_h, grid_d),
        in_specs=[feat_spec, feat_spec],
        out_specs=out_spec,
        compiler_params=pltpu.CompilerParams(
            dimension_semantics=("parallel", "arbitrary"),
            vmem_limit_bytes=int(vmem_limit),
        ),
        cost_estimate=cost_est,
    )(left_p, right_p)


def _reference_cost(left, right, max_disp):
    """Pure-JAX reimplementation of the PyTorch forward, for verification."""
    B, C, H, W = left.shape
    cost = jnp.zeros((B, C, max_disp, H, W), left.dtype)
    for d in range(max_disp):
        if d > 0:
            cost = cost.at[:, :, d, :, d:].set(
                left[:, :, :, d:] - right[:, :, :, : W - d]
            )
        else:
            cost = cost.at[:, :, 0, :, :].set(left - right)
    return cost


if __name__ == "__main__":
    key = jax.random.PRNGKey(0)
    k_left, k_right = jax.random.split(key)

    B, C, H, W = 2, 4, 16, 16
    max_disp_at_scale = 4

    left_feature = jax.random.normal(k_left, (B, C, H, W), dtype=jnp.float32)
    right_feature = jax.random.normal(k_right, (B, C, H, W), dtype=jnp.float32)

    ref = _reference_cost(left_feature, right_feature, max_disp_at_scale)

    # Default path: output dtype == input dtype (module semantics), exact match.
    cost = jax.block_until_ready(
        cost_generator(left_feature, right_feature, max_disp_at_scale)
    )
    assert cost.shape == (B, C, max_disp_at_scale, H, W)
    assert cost.dtype == left_feature.dtype
    assert jnp.allclose(cost, ref, atol=1e-6), "mismatch vs reference (f32)"

    # bf16-output path: halves the dominant HBM write traffic (largest lever).
    cost_bf16 = jax.block_until_ready(
        cost_generator(
            left_feature, right_feature, max_disp_at_scale, out_dtype=jnp.bfloat16
        )
    )
    assert cost_bf16.dtype == jnp.bfloat16
    assert jnp.allclose(cost_bf16.astype(jnp.float32), ref, atol=5e-2), (
        "mismatch vs reference (bf16)"
    )

    print("KERNEL_OK")
</pallas_src>

<mosaic_0001>
module attributes {stable_mosaic.version = 11 : i64} {
  func.func @_cost_kernel(%arg0: i32, %arg1: i32, %arg2: memref<2x4x8x128xf32, #tpu.memory_space<vmem>>, %arg3: memref<2x4x8x128xf32, #tpu.memory_space<vmem>>, %arg4: memref<2x4x4x8x16xf32, #tpu.memory_space<vmem>>) attributes {dimension_semantics = [#tpu.dimension_semantics<parallel>, #tpu.dimension_semantics<arbitrary>], iteration_bounds = array<i64: 2, 1>, scalar_prefetch = 0 : i64, scratch_operands = 0 : i64, tpu.core_type = #tpu.core_type<tc>, window_params = [{transform_indices = @transform_0, window_bounds = array<i64: 2, 4, 8, 128>}, {transform_indices = @transform_1, window_bounds = array<i64: 2, 4, 8, 128>}, {transform_indices = @transform_2, window_bounds = array<i64: 2, 4, 4, 8, 16>}]} {
    %c0 = arith.constant 0 : index
    %c0_0 = arith.constant 0 : index
    %c0_1 = arith.constant 0 : index
    %c0_2 = arith.constant 0 : index
    %0 = vector.load %arg2[%c0, %c0_0, %c0_1, %c0_2] : memref<2x4x8x128xf32, #tpu.memory_space<vmem>>, vector<2x4x8x128xf32>
    %c0_3 = arith.constant 0 : index
    %c0_4 = arith.constant 0 : index
    %c0_5 = arith.constant 0 : index
    %c0_6 = arith.constant 0 : index
    %1 = vector.load %arg3[%c0_3, %c0_4, %c0_5, %c0_6] : memref<2x4x8x128xf32, #tpu.memory_space<vmem>>, vector<2x4x8x128xf32>
    %2 = vector.shape_cast %0 : vector<2x4x8x128xf32> to vector<64x128xf32>
    %3 = vector.shape_cast %1 : vector<2x4x8x128xf32> to vector<64x128xf32>
    %4 = tpu.iota {dimensions = array<i32: 1>} : vector<1x128xi32>
    %c4_i32 = arith.constant 4 : i32
    %5 = arith.muli %arg1, %c4_i32 : i32
    %6 = tpu.dynamic_rotate %3 by %5 dim 1 : vector<64x128xf32>, i32 -> vector<64x128xf32>
    %c0_i32 = arith.constant 0 : i32
    %7 = arith.addi %5, %c0_i32 : i32
    %8 = arith.subf %2, %6 : vector<64x128xf32>
    %9 = vector.broadcast %7 : i32 to vector<1x128xi32>
    %10 = arith.cmpi sge, %4, %9 : vector<1x128xi32>
    %cst = arith.constant 0.000000e+00 : f32
    %11 = vector.shape_cast %10 : vector<1x128xi1> to vector<1x128xi1>
    %12 = vector.broadcast %11 : vector<1x128xi1> to vector<64x128xi1>
    %13 = vector.broadcast %cst : f32 to vector<64x128xf32>
    %14 = arith.select %12, %8, %13 : vector<64x128xi1>, vector<64x128xf32>
    %15 = vector.shape_cast %14 : vector<64x128xf32> to vector<2x4x8x128xf32>
    %16 = vector.extract_strided_slice %15 {offsets = [0, 0, 0, 0], sizes = [2, 4, 8, 16], strides = [1, 1, 1, 1]} : vector<2x4x8x128xf32> to vector<2x4x8x16xf32>
    %c0_7 = arith.constant 0 : index
    %c0_8 = arith.constant 0 : index
    %c0_9 = arith.constant 0 : index
    %c0_10 = arith.constant 0 : index
    %c0_11 = arith.constant 0 : index
    %17 = vector.load %arg4[%c0_7, %c0_8, %c0_9, %c0_10, %c0_11] : memref<2x4x4x8x16xf32, #tpu.memory_space<vmem>>, vector<2x4x1x8x16xf32>
    %18 = vector.shape_cast %17 : vector<2x4x1x8x16xf32> to vector<2x4x8x16xf32>
    %19 = vector.shape_cast %16 : vector<2x4x8x16xf32> to vector<2x4x1x8x16xf32>
    tpu.vector_store %arg4[%c0_7, %c0_8, %c0_9, %c0_10, %c0_11], %19 {strides = array<i32>} : memref<2x4x4x8x16xf32, #tpu.memory_space<vmem>>, vector<2x4x1x8x16xf32>,
    %c1_i32 = arith.constant 1 : i32
    %20 = tpu.dynamic_rotate %6 by %c1_i32 dim 1 : vector<64x128xf32>, i32 -> vector<64x128xf32>
    %c1_i32_12 = arith.constant 1 : i32
    %21 = arith.addi %5, %c1_i32_12 : i32
    %22 = arith.subf %2, %20 : vector<64x128xf32>
    %23 = vector.broadcast %21 : i32 to vector<1x128xi32>
    %24 = arith.cmpi sge, %4, %23 : vector<1x128xi32>
    %cst_13 = arith.constant 0.000000e+00 : f32
    %25 = vector.shape_cast %24 : vector<1x128xi1> to vector<1x128xi1>
    %26 = vector.broadcast %25 : vector<1x128xi1> to vector<64x128xi1>
    %27 = vector.broadcast %cst_13 : f32 to vector<64x128xf32>
    %28 = arith.select %26, %22, %27 : vector<64x128xi1>, vector<64x128xf32>
    %29 = vector.shape_cast %28 : vector<64x128xf32> to vector<2x4x8x128xf32>
    %30 = vector.extract_strided_slice %29 {offsets = [0, 0, 0, 0], sizes = [2, 4, 8, 16], strides = [1, 1, 1, 1]} : vector<2x4x8x128xf32> to vector<2x4x8x16xf32>
    %c0_14 = arith.constant 0 : index
    %c0_15 = arith.constant 0 : index
    %c1 = arith.constant 1 : index
    %c0_16 = arith.constant 0 : index
    %c0_17 = arith.constant 0 : index
    %31 = vector.load %arg4[%c0_14, %c0_15, %c1, %c0_16, %c0_17] : memref<2x4x4x8x16xf32, #tpu.memory_space<vmem>>, vector<2x4x1x8x16xf32>
    %32 = vector.shape_cast %31 : vector<2x4x1x8x16xf32> to vector<2x4x8x16xf32>
    %33 = vector.shape_cast %30 : vector<2x4x8x16xf32> to vector<2x4x1x8x16xf32>
    tpu.vector_store %arg4[%c0_14, %c0_15, %c1, %c0_16, %c0_17], %33 {strides = array<i32>} : memref<2x4x4x8x16xf32, #tpu.memory_space<vmem>>, vector<2x4x1x8x16xf32>,
    %c1_i32_18 = arith.constant 1 : i32
    %34 = tpu.dynamic_rotate %20 by %c1_i32_18 dim 1 : vector<64x128xf32>, i32 -> vector<64x128xf32>
    %c2_i32 = arith.constant 2 : i32
    %35 = arith.addi %5, %c2_i32 : i32
    %36 = arith.subf %2, %34 : vector<64x128xf32>
    %37 = vector.broadcast %35 : i32 to vector<1x128xi32>
    %38 = arith.cmpi sge, %4, %37 : vector<1x128xi32>
    %cst_19 = arith.constant 0.000000e+00 : f32
    %39 = vector.shape_cast %38 : vector<1x128xi1> to vector<1x128xi1>
    %40 = vector.broadcast %39 : vector<1x128xi1> to vector<64x128xi1>
    %41 = vector.broadcast %cst_19 : f32 to vector<64x128xf32>
    %42 = arith.select %40, %36, %41 : vector<64x128xi1>, vector<64x128xf32>
    %43 = vector.shape_cast %42 : vector<64x128xf32> to vector<2x4x8x128xf32>
    %44 = vector.extract_strided_slice %43 {offsets = [0, 0, 0, 0], sizes = [2, 4, 8, 16], strides = [1, 1, 1, 1]} : vector<2x4x8x128xf32> to vector<2x4x8x16xf32>
    %c0_20 = arith.constant 0 : index
    %c0_21 = arith.constant 0 : index
    %c2 = arith.constant 2 : index
    %c0_22 = arith.constant 0 : index
    %c0_23 = arith.constant 0 : index
    %45 = vector.load %arg4[%c0_20, %c0_21, %c2, %c0_22, %c0_23] : memref<2x4x4x8x16xf32, #tpu.memory_space<vmem>>, vector<2x4x1x8x16xf32>
    %46 = vector.shape_cast %45 : vector<2x4x1x8x16xf32> to vector<2x4x8x16xf32>
    %47 = vector.shape_cast %44 : vector<2x4x8x16xf32> to vector<2x4x1x8x16xf32>
    tpu.vector_store %arg4[%c0_20, %c0_21, %c2, %c0_22, %c0_23], %47 {strides = array<i32>} : memref<2x4x4x8x16xf32, #tpu.memory_space<vmem>>, vector<2x4x1x8x16xf32>,
    %c1_i32_24 = arith.constant 1 : i32
    %48 = tpu.dynamic_rotate %34 by %c1_i32_24 dim 1 : vector<64x128xf32>, i32 -> vector<64x128xf32>
    %c3_i32 = arith.constant 3 : i32
    %49 = arith.addi %5, %c3_i32 : i32
    %50 = arith.subf %2, %48 : vector<64x128xf32>
    %51 = vector.broadcast %49 : i32 to vector<1x128xi32>
    %52 = arith.cmpi sge, %4, %51 : vector<1x128xi32>
    %cst_25 = arith.constant 0.000000e+00 : f32
    %53 = vector.shape_cast %52 : vector<1x128xi1> to vector<1x128xi1>
    %54 = vector.broadcast %53 : vector<1x128xi1> to vector<64x128xi1>
    %55 = vector.broadcast %cst_25 : f32 to vector<64x128xf32>
    %56 = arith.select %54, %50, %55 : vector<64x128xi1>, vector<64x128xf32>
    %57 = vector.shape_cast %56 : vector<64x128xf32> to vector<2x4x8x128xf32>
    %58 = vector.extract_strided_slice %57 {offsets = [0, 0, 0, 0], sizes = [2, 4, 8, 16], strides = [1, 1, 1, 1]} : vector<2x4x8x128xf32> to vector<2x4x8x16xf32>
    %c0_26 = arith.constant 0 : index
    %c0_27 = arith.constant 0 : index
    %c3 = arith.constant 3 : index
    %c0_28 = arith.constant 0 : index
    %c0_29 = arith.constant 0 : index
    %59 = vector.load %arg4[%c0_26, %c0_27, %c3, %c0_28, %c0_29] : memref<2x4x4x8x16xf32, #tpu.memory_space<vmem>>, vector<2x4x1x8x16xf32>
    %60 = vector.shape_cast %59 : vector<2x4x1x8x16xf32> to vector<2x4x8x16xf32>
    %61 = vector.shape_cast %58 : vector<2x4x8x16xf32> to vector<2x4x1x8x16xf32>
    tpu.vector_store %arg4[%c0_26, %c0_27, %c3, %c0_28, %c0_29], %61 {strides = array<i32>} : memref<2x4x4x8x16xf32, #tpu.memory_space<vmem>>, vector<2x4x1x8x16xf32>,
    return
  }
  func.func @transform_0(%arg0: i32, %arg1: i32) -> (i32, i32, i32, i32) {
    %c0_i32 = arith.constant 0 : i32
    %c0_i32_0 = arith.constant 0 : i32
    %c0_i32_1 = arith.constant 0 : i32
    %c0_i32_2 = arith.constant 0 : i32
    return %c0_i32, %c0_i32_0, %arg0, %c0_i32_1 : i32, i32, i32, i32
  }
  func.func @transform_1(%arg0: i32, %arg1: i32) -> (i32, i32, i32, i32) {
    %c0_i32 = arith.constant 0 : i32
    %c0_i32_0 = arith.constant 0 : i32
    %c0_i32_1 = arith.constant 0 : i32
    %c0_i32_2 = arith.constant 0 : i32
    return %c0_i32, %c0_i32_0, %arg0, %c0_i32_1 : i32, i32, i32, i32
  }
  func.func @transform_2(%arg0: i32, %arg1: i32) -> (i32, i32, i32, i32, i32) {
    %c0_i32 = arith.constant 0 : i32
    %c0_i32_0 = arith.constant 0 : i32
    %c0_i32_1 = arith.constant 0 : i32
    %c0_i32_2 = arith.constant 0 : i32
    return %c0_i32, %c0_i32_0, %arg1, %arg0, %c0_i32_1 : i32, i32, i32, i32, i32
  }
}

</mosaic_0001>

<llo_original>
// kernel: tpu_custom_call.1
$region0: #{tpu_custom_call.1}
  #allocation0 [shape = 'u32[]', space=smem, size = 0x4, offset = 0x4, fixed_abs, tag = 'smem constant byte address 0x4 - core index']
  #allocation1 [shape = 'u32[72,128]{1,0:T(1,128)}', space=vmem, size = 0x9000, scoped, tag = 'internal scratch']
  %s0 = inlined_call_operand.hbm [shape: f32[2,4,16,128], index: 0, kind: input, shape index: {}]
  %s1 = inlined_call_operand.hbm [shape: f32[2,4,16,128], index: 1, kind: input, shape index: {}]
  %s2 = inlined_call_operand.hbm [shape: f32[2,4,4,16,16], index: 2, kind: output, shape index: {}]
  %s3 = sld [smem:[#allocation0]]
  $region49: #{tpu_custom_call.1} parent=0
    _
  %s5 = ssub.s32 1, %s3
  %s6 = scalar_select 0, %s5, %s3
  $region1: #{tpu_custom_call.1} parent=0
    #allocation2 [shape = 'u8[65536]{0}', space=vmem, size = 0x10000, scoped, tag = 'input window, operand 0']
    #allocation3 [shape = 's32[2]{0}', space=sflag, size = 0x8, scoped, tag = 'scoped memory for tpu_custom_call.1']
    #allocation4 [shape = 's32[2]{0}', space=sflag, size = 0x8, scoped, tag = 'scoped memory for tpu_custom_call.1']
    #allocation5 [shape = 'u8[65536]{0}', space=vmem, size = 0x10000, scoped, tag = 'input window, operand 1']
    #allocation6 [shape = 's32[2]{0}', space=sflag, size = 0x8, scoped, tag = 'scoped memory for tpu_custom_call.1']
    #allocation7 [shape = 'u8[262144]{0}', space=vmem, size = 0x40000, scoped, tag = 'output window, operand 0']
    %7 = vsyncpa [#allocation3], 0
    %s8 = scalar_lea.sflag [#allocation3], 1
    %9 = vsyncpa %s8, 0
    %10 = vsyncpa [#allocation6], 0
    %s11 = scalar_lea.sflag [#allocation6], 1
    %12 = vsyncpa %s11, 0
    %13 = vsyncpa [#allocation4], 0
    %s14 = scalar_lea.sflag [#allocation4], 1
    %15 = vsyncpa %s14, 0
    loop: start=0, step=1, limit=4
    $region2: #{tpu_custom_call.1} parent=1 // loop_pre_header
      _
    $region3: #{tpu_custom_call.1} parent=1 // loop_header
      %s17 = sphi 0, %s21
      %p18 = scmp.ge.s32.totalorder %s17, 4
      %s24 = sphi 0, %s36
      %s25 = sphi 0, %s32
      %s26 = sphi 0, %s24
      %s27 = sphi 0, %s25
      %s28 = sphi 0, %s26
      %s29 = sphi 0, %s27
      %s39 = sphi 0, %s41
      %s42 = sphi 0, %s39
      %s43 = sphi 0, %s42
      %s59 = sphi 0, %s43
      %s65 = sphi 0, %s67
      %s68 = sphi 0, %s65
      %s69 = sphi 0, %s68
      %s85 = sphi 0, %s69
      %s93 = sphi 0, %s95
      %s96 = sphi 0, %s93
      %s97 = sphi 0, %s96
      %s113 = sphi 0, %s97
    $region4: #{tpu_custom_call.1} parent=1 // loop_header_branch
      %20 = sbr.rel (%p18) target = $region8
    $region5: #{tpu_custom_call.1} parent=1 // loop_body
      %s22 = ssub.s32 %s17, 1
      %s23 = ssub.s32 %s17, 2
      %s30 = sadd.s32 1, %s25
      %p31 = scmp.ge.s32.totalorder %s30, 1
      %s32 = scalar_select %p31, 0, %s30
      %s33 = sadd.s32 1, %s24
      %s34 = scalar_select %p31, %s33, %s24
      %p35 = scmp.ge.s32.totalorder %s34, 2
      %s36 = scalar_select %p35, 0, %s34
      %s37 = ssub.s32 %s24, %s36
      %p38 = scmp.eq.s32.totalorder %s37, 0
      %s40 = sadd.s32 %s39, 1
      %s41 = scalar_select %p38, %s39, %s40
      %p44 = pneg %p38
      %p45 = scmp.eq.s32.totalorder %s17, 1
      %p46 = por %p44, %p45
      %p47 = scmp.ne.s32.totalorder %s39, %s42
      %p48 = scmp.eq.s32.totalorder %s17, 0
      %p49 = por %p47, %p48
      %p50 = scmp.ne.s32.totalorder %s39, %s42
      %p51 = scmp.eq.s32.totalorder %s22, 1
      %p52 = por %p50, %p51
      %p53 = scmp.ne.s32.totalorder %s42, %s43
      %p54 = scmp.eq.s32.totalorder %s22, 0
      %p55 = por %p53, %p54
      %p56 = scmp.ne.s32.totalorder %s42, %s43
      %p57 = scmp.eq.s32.totalorder %s23, 1
      %p58 = por %p56, %p57
      %p60 = scmp.ne.s32.totalorder %s43, %s59
      %p61 = scmp.eq.s32.totalorder %s23, 0
      %p62 = por %p60, %p61
      %s63 = ssub.s32 %s24, %s36
      %p64 = scmp.eq.s32.totalorder %s63, 0
      %s66 = sadd.s32 %s65, 1
      %s67 = scalar_select %p64, %s65, %s66
      %p70 = pneg %p64
      %p71 = scmp.eq.s32.totalorder %s17, 1
      %p72 = por %p70, %p71
      %p73 = scmp.ne.s32.totalorder %s65, %s68
      %p74 = scmp.eq.s32.totalorder %s17, 0
      %p75 = por %p73, %p74
      %p76 = scmp.ne.s32.totalorder %s65, %s68
      %p77 = scmp.eq.s32.totalorder %s22, 1
      %p78 = por %p76, %p77
      %p79 = scmp.ne.s32.totalorder %s68, %s69
      %p80 = scmp.eq.s32.totalorder %s22, 0
      %p81 = por %p79, %p80
      %p82 = scmp.ne.s32.totalorder %s68, %s69
      %p83 = scmp.eq.s32.totalorder %s23, 1
      %p84 = por %p82, %p83
      %p86 = scmp.ne.s32.totalorder %s69, %s85
      %p87 = scmp.eq.s32.totalorder %s23, 0
      %p88 = por %p86, %p87
      %s89 = ssub.s32 %s25, %s32
      %s90 = ssub.s32 %s24, %s36
      %s91 = sor.u32 %s89, %s90
      %p92 = scmp.eq.s32.totalorder %s91, 0
      %s94 = sadd.s32 %s93, 1
      %s95 = scalar_select %p92, %s93, %s94
      %p98 = pneg %p92
      %p99 = scmp.eq.s32.totalorder %s17, 1
      %p100 = por %p98, %p99
      %p101 = scmp.ne.s32.totalorder %s93, %s96
      %p102 = scmp.eq.s32.totalorder %s17, 0
      %p103 = por %p101, %p102
      %p104 = scmp.ne.s32.totalorder %s93, %s96
      %p105 = scmp.eq.s32.totalorder %s22, 1
      %p106 = por %p104, %p105
      %p107 = scmp.ne.s32.totalorder %s96, %s97
      %p108 = scmp.eq.s32.totalorder %s22, 0
      %p109 = por %p107, %p108
      %p110 = scmp.ne.s32.totalorder %s96, %s97
      %p111 = scmp.eq.s32.totalorder %s23, 1
      %p112 = por %p110, %p111
      %p114 = scmp.ne.s32.totalorder %s97, %s113
      %p115 = scmp.eq.s32.totalorder %s23, 0
      %p116 = por %p114, %p115
      %p117 = scmp.le.s32.totalorder 1, %s17
      %p118 = scmp.lt.s32.totalorder %s17, 3
      %p119 = pnand %p117, %p118
      %p120 = pneg %p119
      // Predicated region
      $region9: #{tpu_custom_call.1} parent=5 // pred_check
        _
      $region10: #{tpu_custom_call.1} parent=5 // pred_check_branch
        %122 = sbr.rel (%p119) target = $region12
      $region11: #{tpu_custom_call.1} parent=5 // pred_region
        %s123 = ssub.s32 %s17, 1
      $region12: #{tpu_custom_call.1} parent=5 // pred_fallthru
        _
      %p124 = scmp.lt.s32.totalorder %s17, 2
      // Predicated region
      $region13: #{tpu_custom_call.1} parent=5 // pred_check
        %p125 = pneg %p124
      $region14: #{tpu_custom_call.1} parent=5 // pred_check_branch
        %127 = sbr.rel (%p125) target = $region16
      $region15: #{tpu_custom_call.1} parent=5 // pred_region
        // Predicated region
        $region17: #{tpu_custom_call.1} parent=15 // pred_check
          %p128 = pneg %p49
        $region18: #{tpu_custom_call.1} parent=15 // pred_check_branch
          %130 = sbr.rel (%p128) target = $region20
        $region19: #{tpu_custom_call.1} parent=15 // pred_region
          %s131 = sand.u32 %s39, 1
          %s132 = scalar_lea.sflag [#allocation3], %s131
          %s133 = sand.u32 %s39, 1
          %s134 = smul.addr %s133, 64
          %s135 = scalar_lea.vmem [#allocation2], %s134
          %137 = vsyncadd %s132, 0
          %s138 = smul.addr %s24, 8
          %s139 = scalar_lea.hbm %s0, %s138
          %s140 = sshll.u32 %s139, 4
          %s141 = int_to_ptr.hbm [resolvable:$true] %s140
          %s142 = sshll.u32 %s135, 4
          %s143 = int_to_ptr.vmem [resolvable:$true] %s142
          %148 = dma.hbm_to_vmem [thread:$0]  %s141, 1024, %s143, %s132, 256, 128, 8
        $region20: #{tpu_custom_call.1} parent=15 // pred_fallthru
          _
        // Predicated region
        $region21: #{tpu_custom_call.1} parent=15 // pred_check
          %p149 = pneg %p75
        $region22: #{tpu_custom_call.1} parent=15 // pred_check_branch
          %151 = sbr.rel (%p149) target = $region24
        $region23: #{tpu_custom_call.1} parent=15 // pred_region
          %s152 = sand.u32 %s65, 1
          %s153 = scalar_lea.sflag [#allocation6], %s152
          %s154 = sand.u32 %s65, 1
          %s155 = smul.addr %s154, 64
          %s156 = scalar_lea.vmem [#allocation5], %s155
          %158 = vsyncadd %s153, 0
          %s159 = smul.addr %s24, 8
          %s160 = scalar_lea.hbm %s1, %s159
          %s161 = sshll.u32 %s160, 4
          %s162 = int_to_ptr.hbm [resolvable:$true] %s161
          %s163 = sshll.u32 %s156, 4
          %s164 = int_to_ptr.vmem [resolvable:$true] %s163
          %169 = dma.hbm_to_vmem [thread:$0]  %s162, 1024, %s164, %s153, 256, 128, 8
        $region24: #{tpu_custom_call.1} parent=15 // pred_fallthru
          _
      $region16: #{tpu_custom_call.1} parent=5 // pred_fallthru
        _
      %p170 = scmp.le.s32.totalorder 1, %s17
      %p171 = scmp.lt.s32.totalorder %s17, 3
      %p172 = pnand %p170, %p171
      %p173 = pneg %p172
      // Predicated region
      $region25: #{tpu_custom_call.1} parent=5 // pred_check
        _
      $region26: #{tpu_custom_call.1} parent=5 // pred_check_branch
        %175 = sbr.rel (%p172) target = $region28
      $region27: #{tpu_custom_call.1} parent=5 // pred_region
        %s176 = ssub.s32 %s17, 1
        %s177 = sand.u32 %s42, 1
        %s178 = scalar_lea.sflag [#allocation3], %s177
        %s179 = sand.u32 %s42, 1
        %s180 = smul.addr %s179, 64
        %s181 = scalar_lea.vmem [#allocation2], %s180
        // Predicated region
        $region29: #{tpu_custom_call.1} parent=27 // pred_check
          %p182 = pneg %p55
        $region30: #{tpu_custom_call.1} parent=27 // pred_check_branch
          %184 = sbr.rel (%p182) target = $region32
        $region31: #{tpu_custom_call.1} parent=27 // pred_region
          %186 = dma.done %s178, 1024
        $region32: #{tpu_custom_call.1} parent=27 // pred_fallthru
          _
        %s187 = sand.u32 %s68, 1
        %s188 = scalar_lea.sflag [#allocation6], %s187
        %s189 = sand.u32 %s68, 1
        %s190 = smul.addr %s189, 64
        %s191 = scalar_lea.vmem [#allocation5], %s190
        // Predicated region
        $region33: #{tpu_custom_call.1} parent=27 // pred_check
          %p192 = pneg %p81
        $region34: #{tpu_custom_call.1} parent=27 // pred_check_branch
          %194 = sbr.rel (%p192) target = $region36
        $region35: #{tpu_custom_call.1} parent=27 // pred_region
          %196 = dma.done %s188, 1024
        $region36: #{tpu_custom_call.1} parent=27 // pred_fallthru
          _
        %s197 = sand.u32 %s42, 1
        %s198 = scalar_lea.sflag [#allocation3], %s197
        %s199 = sand.u32 %s42, 1
        %s200 = smul.addr %s199, 64
        %s201 = scalar_lea.vmem [#allocation2], %s200
        %p202 = pneg %p55
        %p203 = pneg %p52
        %s204 = sand.u32 %s68, 1
        %s205 = scalar_lea.sflag [#allocation6], %s204
        %s206 = sand.u32 %s68, 1
        %s207 = smul.addr %s206, 64
        %s208 = scalar_lea.vmem [#allocation5], %s207
        %p209 = pneg %p81
        %p210 = pneg %p78
        %p211 = pneg %p109
        %p212 = pneg %p106
        %s213 = sand.u32 %s96, 1
        %s214 = scalar_lea.sflag [#allocation4], %s213
        %s215 = sand.u32 %s96, 1
        %s216 = smul.addr %s215, 256
        %s217 = scalar_lea.vmem [#allocation7], %s216
        %s218 = smul.u32 4, %s27
        %v219 = vld [vmem:[%s181] sm:$0xff]
        %v220 = vld [vmem:[%s181 + $0x8] sm:$0xff]
        %v221 = vld [vmem:[%s181 + $0x10] sm:$0xff]
        %v222 = vld [vmem:[%s181 + $0x18] sm:$0xff]
        %v223 = vld [vmem:[%s181 + $0x20] sm:$0xff]
        %v224 = vld [vmem:[%s181 + $0x28] sm:$0xff]
        %v225 = vld [vmem:[%s181 + $0x30] sm:$0xff]
        %v226 = vld [vmem:[%s181 + $0x38] sm:$0xff]
        %v227 = vld [vmem:[%s191] sm:$0xff]
        %v228 = vld [vmem:[%s191 + $0x8] sm:$0xff]
        %v229 = vld [vmem:[%s191 + $0x10] sm:$0xff]
        %v230 = vld [vmem:[%s191 + $0x18] sm:$0xff]
        %v231 = vld [vmem:[%s191 + $0x20] sm:$0xff]
        %v232 = vld [vmem:[%s191 + $0x28] sm:$0xff]
        %v233 = vld [vmem:[%s191 + $0x30] sm:$0xff]
        %v234 = vld [vmem:[%s191 + $0x38] sm:$0xff]
        %v235 = vlaneseq
        %v236 = vand.u32 %v235, 127
        %s237 = smul.u32 %s27, 4
        %s238 = sand.u32 %s237, 127
        %s239 = sand.u32 %s238, 127
        %240 = vrot.lane.b32.xlu0 %v227, %s239
        %v241 = vpop.permute.xlu0 %240
        %242 = vrot.lane.b32.xlu0 %v228, %s239
        %v243 = vpop.permute.xlu0 %242
        %244 = vrot.lane.b32.xlu0 %v229, %s239
        %v245 = vpop.permute.xlu0 %244
        %246 = vrot.lane.b32.xlu0 %v230, %s239
        %v247 = vpop.permute.xlu0 %246
        %248 = vrot.lane.b32.xlu0 %v231, %s239
        %v249 = vpop.permute.xlu0 %248
        %250 = vrot.lane.b32.xlu0 %v232, %s239
        %v251 = vpop.permute.xlu0 %250
        %252 = vrot.lane.b32.xlu0 %v233, %s239
        %v253 = vpop.permute.xlu0 %252
        %254 = vrot.lane.b32.xlu0 %v234, %s239
        %v255 = vpop.permute.xlu0 %254
        %v256 = vsub.f32 %v219, %v241
        %v257 = vsub.f32 %v220, %v243
        %v258 = vsub.f32 %v221, %v245
        %v259 = vsub.f32 %v222, %v247
        %v260 = vsub.f32 %v223, %v249
        %v261 = vsub.f32 %v224, %v251
        %v262 = vsub.f32 %v225, %v253
        %v263 = vsub.f32 %v226, %v255
        %v264 = vstv %s237
        %vm265 = vcmp.ge.s32.totalorder %v236, %v264
        %v266 = vsel %vm265, 1, 0
        %vm267 = vcmp.eq.s32.totalorder %v266, 1
        %v268 = vsel %vm267, %v256, 0.0
        %v269 = vsel %vm267, %v257, 0.0
        %v270 = vsel %vm267, %v258, 0.0
        %v271 = vsel %vm267, %v259, 0.0
        %v272 = vsel %vm267, %v260, 0.0
        %v273 = vsel %vm267, %v261, 0.0
        %v274 = vsel %vm267, %v262, 0.0
        %v275 = vsel %vm267, %v263, 0.0
        %vm276 = vcmask 130048
        %277 = vst.msk [vmem:[%s217] sm:$0xff] %vm276, %v268
        %278 = vst.msk [vmem:[%s217 + $0x20] sm:$0xff] %vm276, %v269
        %279 = vst.msk [vmem:[%s217 + $0x40] sm:$0xff] %vm276, %v270
        %280 = vst.msk [vmem:[%s217 + $0x60] sm:$0xff] %vm276, %v271
        %281 = vst.msk [vmem:[%s217 + $0x80] sm:$0xff] %vm276, %v272
        %282 = vst.msk [vmem:[%s217 + $0xa0] sm:$0xff] %vm276, %v273
        %283 = vst.msk [vmem:[%s217 + $0xc0] sm:$0xff] %vm276, %v274
        %284 = vst.msk [vmem:[%s217 + $0xe0] sm:$0xff] %vm276, %v275
        %285 = vrot.lane.b32.xlu0 %v241, 1
        %v286 = vpop.permute.xlu0 %285
        %287 = vrot.lane.b32.xlu0 %v243, 1
        %v288 = vpop.permute.xlu0 %287
        %289 = vrot.lane.b32.xlu0 %v245, 1
        %v290 = vpop.permute.xlu0 %289
        %291 = vrot.lane.b32.xlu0 %v247, 1
        %v292 = vpop.permute.xlu0 %291
        %293 = vrot.lane.b32.xlu0 %v249, 1
        %v294 = vpop.permute.xlu0 %293
        %295 = vrot.lane.b32.xlu0 %v251, 1
        %v296 = vpop.permute.xlu0 %295
        %297 = vrot.lane.b32.xlu0 %v253, 1
        %v298 = vpop.permute.xlu0 %297
        %299 = vrot.lane.b32.xlu0 %v255, 1
        %v300 = vpop.permute.xlu0 %299
        %s301 = sadd.s32 %s237, 1
        %v302 = vsub.f32 %v219, %v286
        %v303 = vsub.f32 %v220, %v288
        %v304 = vsub.f32 %v221, %v290
        %v305 = vsub.f32 %v222, %v292
        %v306 = vsub.f32 %v223, %v294
        %v307 = vsub.f32 %v224, %v296
        %v308 = vsub.f32 %v225, %v298
        %v309 = vsub.f32 %v226, %v300
        %v310 = vstv %s301
        %vm311 = vcmp.ge.s32.totalorder %v236, %v310
        %v312 = vsel %vm311, 1, 0
        %vm313 = vcmp.eq.s32.totalorder %v312, 1
        %v314 = vsel %vm313, %v302, 0.0
        %v315 = vsel %vm313, %v303, 0.0
        %v316 = vsel %vm313, %v304, 0.0
        %v317 = vsel %vm313, %v305, 0.0
        %v318 = vsel %vm313, %v306, 0.0
        %v319 = vsel %vm313, %v307, 0.0
        %v320 = vsel %vm313, %v308, 0.0
        %v321 = vsel %vm313, %v309, 0.0
        %s322 = scalar_lea.vmem %s217, 8 [#allocation7]
        %323 = vst.msk [vmem:[%s322] sm:$0xff] %vm276, %v314
        %324 = vst.msk [vmem:[%s322 + $0x20] sm:$0xff] %vm276, %v315
        %325 = vst.msk [vmem:[%s322 + $0x40] sm:$0xff] %vm276, %v316
        %326 = vst.msk [vmem:[%s322 + $0x60] sm:$0xff] %vm276, %v317
        %327 = vst.msk [vmem:[%s322 + $0x80] sm:$0xff] %vm276, %v318
        %328 = vst.msk [vmem:[%s322 + $0xa0] sm:$0xff] %vm276, %v319
        %329 = vst.msk [vmem:[%s322 + $0xc0] sm:$0xff] %vm276, %v320
        %330 = vst.msk [vmem:[%s322 + $0xe0] sm:$0xff] %vm276, %v321
        %331 = vrot.lane.b32.xlu0 %v286, 1
        %v332 = vpop.permute.xlu0 %331
        %333 = vrot.lane.b32.xlu0 %v288, 1
        %v334 = vpop.permute.xlu0 %333
        %335 = vrot.lane.b32.xlu0 %v290, 1
        %v336 = vpop.permute.xlu0 %335
        %337 = vrot.lane.b32.xlu0 %v292, 1
        %v338 = vpop.permute.xlu0 %337
        %339 = vrot.lane.b32.xlu0 %v294, 1
        %v340 = vpop.permute.xlu0 %339
        %341 = vrot.lane.b32.xlu0 %v296, 1
        %v342 = vpop.permute.xlu0 %341
        %343 = vrot.lane.b32.xlu0 %v298, 1
        %v344 = vpop.permute.xlu0 %343
        %345 = vrot.lane.b32.xlu0 %v300, 1
        %v346 = vpop.permute.xlu0 %345
        %s347 = sadd.s32 %s237, 2
        %v348 = vsub.f32 %v219, %v332
        %v349 = vsub.f32 %v220, %v334
        %v350 = vsub.f32 %v221, %v336
        %v351 = vsub.f32 %v222, %v338
        %v352 = vsub.f32 %v223, %v340
        %v353 = vsub.f32 %v224, %v342
        %v354 = vsub.f32 %v225, %v344
        %v355 = vsub.f32 %v226, %v346
        %v356 = vstv %s347
        %vm357 = vcmp.ge.s32.totalorder %v236, %v356
        %v358 = vsel %vm357, 1, 0
        %vm359 = vcmp.eq.s32.totalorder %v358, 1
        %v360 = vsel %vm359, %v348, 0.0
        %v361 = vsel %vm359, %v349, 0.0
        %v362 = vsel %vm359, %v350, 0.0
        %v363 = vsel %vm359, %v351, 0.0
        %v364 = vsel %vm359, %v352, 0.0
        %v365 = vsel %vm359, %v353, 0.0
        %v366 = vsel %vm359, %v354, 0.0
        %v367 = vsel %vm359, %v355, 0.0
        %s368 = scalar_lea.vmem %s217, 16 [#allocation7]
        %369 = vst.msk [vmem:[%s368] sm:$0xff] %vm276, %v360
        %370 = vst.msk [vmem:[%s368 + $0x20] sm:$0xff] %vm276, %v361
        %371 = vst.msk [vmem:[%s368 + $0x40] sm:$0xff] %vm276, %v362
        %372 = vst.msk [vmem:[%s368 + $0x60] sm:$0xff] %vm276, %v363
        %373 = vst.msk [vmem:[%s368 + $0x80] sm:$0xff] %vm276, %v364
        %374 = vst.msk [vmem:[%s368 + $0xa0] sm:$0xff] %vm276, %v365
        %375 = vst.msk [vmem:[%s368 + $0xc0] sm:$0xff] %vm276, %v366
        %376 = vst.msk [vmem:[%s368 + $0xe0] sm:$0xff] %vm276, %v367
        %377 = vrot.lane.b32.xlu0 %v332, 1
        %v378 = vpop.permute.xlu0 %377
        %379 = vrot.lane.b32.xlu0 %v334, 1
        %v380 = vpop.permute.xlu0 %379
        %381 = vrot.lane.b32.xlu0 %v336, 1
        %v382 = vpop.permute.xlu0 %381
        %383 = vrot.lane.b32.xlu0 %v338, 1
        %v384 = vpop.permute.xlu0 %383
        %385 = vrot.lane.b32.xlu0 %v340, 1
        %v386 = vpop.permute.xlu0 %385
        %387 = vrot.lane.b32.xlu0 %v342, 1
        %v388 = vpop.permute.xlu0 %387
        %389 = vrot.lane.b32.xlu0 %v344, 1
        %v390 = vpop.permute.xlu0 %389
        %391 = vrot.lane.b32.xlu0 %v346, 1
        %v392 = vpop.permute.xlu0 %391
        %s393 = sadd.s32 %s237, 3
        %v394 = vsub.f32 %v219, %v378
        %v395 = vsub.f32 %v220, %v380
        %v396 = vsub.f32 %v221, %v382
        %v397 = vsub.f32 %v222, %v384
        %v398 = vsub.f32 %v223, %v386
        %v399 = vsub.f32 %v224, %v388
        %v400 = vsub.f32 %v225, %v390
        %v401 = vsub.f32 %v226, %v392
        %v402 = vstv %s393
        %vm403 = vcmp.ge.s32.totalorder %v236, %v402
        %v404 = vsel %vm403, 1, 0
        %vm405 = vcmp.eq.s32.totalorder %v404, 1
        %v406 = vsel %vm405, %v394, 0.0
        %v407 = vsel %vm405, %v395, 0.0
        %v408 = vsel %vm405, %v396, 0.0
        %v409 = vsel %vm405, %v397, 0.0
        %v410 = vsel %vm405, %v398, 0.0
        %v411 = vsel %vm405, %v399, 0.0
        %v412 = vsel %vm405, %v400, 0.0
        %v413 = vsel %vm405, %v401, 0.0
        %s414 = scalar_lea.vmem %s217, 24 [#allocation7]
        %415 = vst.msk [vmem:[%s414] sm:$0xff] %vm276, %v406
        %416 = vst.msk [vmem:[%s414 + $0x20] sm:$0xff] %vm276, %v407
        %417 = vst.msk [vmem:[%s414 + $0x40] sm:$0xff] %vm276, %v408
        %418 = vst.msk [vmem:[%s414 + $0x60] sm:$0xff] %vm276, %v409
        %419 = vst.msk [vmem:[%s414 + $0x80] sm:$0xff] %vm276, %v410
        %420 = vst.msk [vmem:[%s414 + $0xa0] sm:$0xff] %vm276, %v411
        %421 = vst.msk [vmem:[%s414 + $0xc0] sm:$0xff] %vm276, %v412
        %422 = vst.msk [vmem:[%s414 + $0xe0] sm:$0xff] %vm276, %v413
        %s423 = sand.u32 %s96, 1
        %s424 = scalar_lea.sflag [#allocation4], %s423
        %s425 = sand.u32 %s96, 1
        %s426 = smul.addr %s425, 256
        %s427 = scalar_lea.vmem [#allocation7], %s426
        // Predicated region
        $region37: #{tpu_custom_call.1} parent=27 // pred_check
          %p428 = pneg %p106
        $region38: #{tpu_custom_call.1} parent=27 // pred_check_branch
          %430 = sbr.rel (%p428) target = $region40
        $region39: #{tpu_custom_call.1} parent=27 // pred_region
          %s431 = smul.u32 4, %s27
          %433 = vsyncadd %s424, 0
          %s434 = smul.addr %s431, 2
          %s435 = sadd.s32 %s26, %s434
          %s436 = smul.addr %s435, 8
          %s437 = scalar_lea.hbm %s2, %s436
          %s438 = sshll.u32 %s427, 4
          %s439 = int_to_ptr.vmem [resolvable:$true] %s438
          %s440 = sshll.u32 %s437, 4
          %s441 = int_to_ptr.hbm [resolvable:$true] %s440
          %446 = dma.vmem_to_hbm [thread:$0]  %s439, 4096, %s441, %s424, 128, 256, 8
        $region40: #{tpu_custom_call.1} parent=27 // pred_fallthru
          _
      $region28: #{tpu_custom_call.1} parent=5 // pred_fallthru
        _
      %p447 = scmp.le.s32.totalorder 2, %s17
      // Predicated region
      $region41: #{tpu_custom_call.1} parent=5 // pred_check
        %p448 = pneg %p447
      $region42: #{tpu_custom_call.1} parent=5 // pred_check_branch
        %450 = sbr.rel (%p448) target = $region44
      $region43: #{tpu_custom_call.1} parent=5 // pred_region
        %s451 = ssub.s32 %s17, 2
        // Predicated region
        $region45: #{tpu_custom_call.1} parent=43 // pred_check
          %p452 = pneg %p112
        $region46: #{tpu_custom_call.1} parent=43 // pred_check_branch
          %454 = sbr.rel (%p452) target = $region48
        $region47: #{tpu_custom_call.1} parent=43 // pred_region
          %s455 = sand.u32 %s97, 1
          %s456 = scalar_lea.sflag [#allocation4], %s455
          %s457 = sand.u32 %s97, 1
          %s458 = smul.addr %s457, 256
          %s459 = scalar_lea.vmem [#allocation7], %s458
          %461 = dma.done %s456, 4096
        $region48: #{tpu_custom_call.1} parent=43 // pred_fallthru
          _
      $region44: #{tpu_custom_call.1} parent=5 // pred_fallthru
        _
    $region6: #{tpu_custom_call.1} parent=1 // loop_footer
      %s21 = sadd.s32 1, %s17
    $region7: #{tpu_custom_call.1} parent=1 // loop_footer_branch
      %16 = sbr.rel target = $region3
    $region8: #{tpu_custom_call.1} parent=1 // loop_exit
      _
    %462 = vsyncpa [#allocation3], 1
    %s463 = scalar_lea.sflag [#allocation3], 1
    %464 = vsyncpa %s463, 1
    %465 = vsyncpa [#allocation6], 1
    %s466 = scalar_lea.sflag [#allocation6], 1
    %467 = vsyncpa %s466, 1
    %468 = vsyncpa [#allocation4], 1
    %s469 = scalar_lea.sflag [#allocation4], 1
    %470 = vsyncpa %s469, 1

</llo_original>
